<compile_context>
chip_gen: v5e
topology: v5e:2x2
jax: 0.10.0
libtpu: 0.0.40
codegen_flags: <defaults>
</compile_context>

<pallas_src>
import numpy as np
import jax
import jax.numpy as jnp
from jax.experimental import pallas as pl
from jax.experimental.pallas import tpu as pltpu


def _round_up(x, mult):
    return ((x + mult - 1) // mult) * mult


# ----------------------------------------------------------------------------
# Kernel
# ----------------------------------------------------------------------------
def _gpconv_kernel(pt_ref, w_ref, b_ref, bias_ref, o_ref):
    # pt_ref   : (1, K, m_tile)          im2col patches for batch n (compute dtype)
    # w_ref    : (OC*rank_pad, K)        conv weights, resident (compute dtype)
    # b_ref    : (OC*rank_pad, m_tile)   low-rank mixing weights B, bf16 in HBM
    # bias_ref : (OC, m_tile)            precomputed sum_r bias[c,r]*B[c,r,m], f32
    # o_ref    : (1, OC, m_tile)         output slab (batch n, all channels, m tile)
    oc, m_tile = o_ref.shape[1], o_ref.shape[2]
    ocr = w_ref.shape[0]
    rank_pad = ocr // oc            # multiple of 8 by construction

    # One big MXU matmul per grid step: (OC*rank_pad, K) @ (K, m_tile) -> f32.
    d = jnp.dot(w_ref[...], pt_ref[0], preferred_element_type=jnp.float32)

    # Fused rank-weighted reduction (no full dw slab, no full f32 upcast of B):
    # accumulate over 8-row (one f32 sublane-group) rank groups into (OC, m_tile).
    d3 = d.reshape(oc, rank_pad, m_tile)            # layout-free: rank_pad % 8 == 0
    b3 = b_ref[...].reshape(oc, rank_pad, m_tile)   # bf16; upcast per group below
    acc = bias_ref[...]                             # f32, folded conv bias
    for g in range(rank_pad // 8):                  # short, statically unrolled
        lo = g * 8
        acc = acc + jnp.sum(
            d3[:, lo:lo + 8, :] * b3[:, lo:lo + 8, :].astype(jnp.float32),
            axis=1)
    o_ref[0] = acc.astype(o_ref.dtype)


# ----------------------------------------------------------------------------
# Wrapper-side glue
# ----------------------------------------------------------------------------
def _im2col(x, kh, kw, stride, padding):
    # x: (N, C, H, W) -> (N, C*kh*kw, Ho*Wo), flattened in (C, kh, kw) order to
    # match PyTorch Conv2d weight.view(OC*rank, -1) ordering.
    N, C, H, W = x.shape
    xp = jnp.pad(x, ((0, 0), (0, 0), (padding, padding), (padding, padding)))
    Ho = (H + 2 * padding - kh) // stride + 1
    Wo = (W + 2 * padding - kw) // stride + 1
    cols = []
    for i in range(kh):
        for j in range(kw):
            cols.append(xp[:, :, i:i + stride * Ho:stride, j:j + stride * Wo:stride])
    p = jnp.stack(cols, axis=2)                 # (N, C, kh*kw, Ho, Wo)
    p = p.reshape(N, C * kh * kw, Ho * Wo)      # (N, K, m)
    return p, Ho, Wo


def _vmem_capacity_bytes():
    # Generation-aware: v7x has 64 MiB per TC, v5e/v6e have 128 MiB.
    try:
        cap = getattr(pltpu.get_tpu_info(), "vmem_capacity_bytes", None)
        if cap:
            return int(cap)
    except Exception:
        pass
    return 64 * 1024 * 1024   # conservative default (v7x per-TC)


def _per_lane_col_bytes(K, OCR, OC, comp_bytes, buffering=2):
    # Bytes per lane-column of the m tile: pipelined blocks + in-kernel
    # f32 intermediates (matmul result d, fused-reduce temporaries, accumulator).
    return (buffering * (K * comp_bytes       # patches block (compute dtype)
                         + OCR * 2            # B block (bf16)
                         + OC * 4)            # bias block (f32)
            + 2 * OC * 4                      # output block (f32, double-buffered)
            + OCR * 4                         # matmul result d (f32)
            + OCR * 4                         # reduce-group temporaries (conservative)
            + OC * 4)                         # (OC, m_tile) accumulator


def _choose_m_tile(m, per_col, vmem_cap):
    m256 = _round_up(m, 256)
    # Block/intermediate budget: smaller on v7x (64 MiB physical VMEM per TC).
    budget = 24 * 1024 * 1024 if vmem_cap <= 64 * 1024 * 1024 else 64 * 1024 * 1024
    mt = (budget // max(per_col, 1)) // 256 * 256
    mt = max(256, min(int(mt), 8192))
    return min(mt, m256)


def gpconv_forward(x, conv_w, conv_b, B, *, out_channels, rank, kernel_size,
                   stride=1, padding=0, compute_dtype=jnp.bfloat16):
    N, C, H, W = x.shape
    kh = kw = kernel_size
    patches, Ho, Wo = _im2col(x, kh, kw, stride, padding)           # (N, K, m)
    K = C * kh * kw
    m = Ho * Wo
    OC = out_channels

    comp_bytes = jnp.dtype(compute_dtype).itemsize
    rank_pad = _round_up(rank, 8)
    OCR = OC * rank_pad

    vmem_cap = _vmem_capacity_bytes()
    per_col = _per_lane_col_bytes(K, OCR, OC, comp_bytes)
    m_tile = _choose_m_tile(m, per_col, vmem_cap)
    m_pad = _round_up(m, m_tile)
    n_m_tiles = m_pad // m_tile

    # ---- parameter plumbing (plain-JAX glue) --------------------------------
    # Conv weights: (OC*rank, C, kh, kw) -> (OC, rank, K) -> zero-pad rank ->
    # (OC*rank_pad, K), cast to the MXU compute dtype.
    w2 = conv_w.reshape(OC, rank, K)
    w2 = jnp.pad(w2, ((0, 0), (0, rank_pad - rank), (0, 0)))
    w_all = w2.reshape(OCR, K).astype(compute_dtype)

    # B: (1, OC, m, rank, 1) -> (OC, rank, m); bias folded:
    #   bias_term[c, m] = sum_r conv_b[c, r] * B[c, r, m]
    # B zero-padded in rank/m and stored bf16 (halves its HBM stream; upcast to
    # f32 inside the kernel before the multiply).  bias_term is tiny -> keep f32.
    b2 = jnp.transpose(B.reshape(OC, m, rank), (0, 2, 1))               # (OC, rank, m)
    bias_term = jnp.einsum('cr,crm->cm', conv_b.reshape(OC, rank), b2)  # (OC, m)
    b2 = jnp.pad(b2, ((0, 0), (0, rank_pad - rank), (0, m_pad - m)))
    b_all = b2.reshape(OCR, m_pad).astype(jnp.bfloat16)
    bias_all = jnp.pad(bias_term, ((0, 0), (0, m_pad - m))).astype(jnp.float32)

    # Patches: zero-pad m, cast to compute dtype (halves HBM/VMEM traffic).
    patches_p = jnp.pad(patches, ((0, 0), (0, 0), (0, m_pad - m))).astype(compute_dtype)

    # ---- VMEM limit (generation-aware) + cost estimate ----------------------
    per_step = m_tile * per_col + 2 * OCR * K * comp_bytes   # + resident weights
    if vmem_cap <= 64 * 1024 * 1024:     # v7x
        vmem_limit = int(min(max(32 * 1024 * 1024, 2 * per_step), 48 * 1024 * 1024))
    else:                                # v5e / v6e
        vmem_limit = int(min(max(32 * 1024 * 1024, 2 * per_step), 100 * 1024 * 1024))
    # TODO(synk): on v5e/v6e, optionally deepen pipelining (pl.Buffered(3)) on the
    # patches/B BlockSpecs to further hide DMA latency.

    cost = pl.CostEstimate(
        flops=int(2 * N * OCR * K * m_pad + 3 * N * OCR * m_pad),
        transcendentals=0,
        # After the grid swap, B / bias / W are streamed once (not per batch).
        bytes_accessed=int(N * K * m_pad * comp_bytes       # patches
                           + OCR * K * comp_bytes           # weights (resident)
                           + OCR * m_pad * 2                # B (bf16, read once)
                           + OC * m_pad * 4                 # folded bias (read once)
                           + N * OC * m_pad * 4),           # output writeback
    )

    # Grid: m tiles OUTER (parallel, megacore-sharded on v7x), batch INNER
    # (arbitrary) so the B / bias block indices are constant across the inner
    # loop and Pallas skips their re-DMA.
    out_flat = pl.pallas_call(
        _gpconv_kernel,
        out_shape=jax.ShapeDtypeStruct((N, OC, m_pad), x.dtype),
        grid_spec=pltpu.PrefetchScalarGridSpec(
            num_scalar_prefetch=0,
            grid=(n_m_tiles, N),
            in_specs=[
                pl.BlockSpec((1, K, m_tile), lambda t, n: (n, 0, t)),    # patches
                pl.BlockSpec((OCR, K), lambda t, n: (0, 0)),             # W (resident)
                pl.BlockSpec((OCR, m_tile), lambda t, n: (0, t)),        # B (bf16)
                pl.BlockSpec((OC, m_tile), lambda t, n: (0, t)),         # bias term
            ],
            out_specs=pl.BlockSpec((1, OC, m_tile), lambda t, n: (n, 0, t)),
        ),
        compiler_params=pltpu.CompilerParams(
            dimension_semantics=("parallel", "arbitrary"),
            vmem_limit_bytes=vmem_limit),
        cost_estimate=cost,
    )(patches_p, w_all, b_all, bias_all)

    return out_flat[:, :, :m].reshape(N, OC, Ho, Wo)


# ----------------------------------------------------------------------------
# Pure-JAX reference (mirrors the PyTorch forward exactly, f32 throughout)
# ----------------------------------------------------------------------------
def gpconv_reference(x, conv_w, conv_b, B, *, out_channels, rank, kernel_size,
                     stride=1, padding=0):
    d = jax.lax.conv_general_dilated(
        x, conv_w, window_strides=(stride, stride),
        padding=[(padding, padding), (padding, padding)],
        dimension_numbers=("NCHW", "OIHW", "NCHW"))
    d = d + conv_b[None, :, None, None]
    N = x.shape[0]
    Ho, Wo = d.shape[2], d.shape[3]
    m = Ho * Wo
    D = d.reshape(N, out_channels, rank, 1, m)
    D = jnp.swapaxes(D, -3, -1)                 # (N, OC, m, 1, rank)
    out = jnp.matmul(D, B)                      # (N, OC, m, 1, 1)
    return out.reshape(N, out_channels, Ho, Wo)


if __name__ == "__main__":
    # Small, module-consistent shapes.
    N, C, H, W = 2, 4, 16, 16
    OC, rank, ks, stride, padding = 4, 10, 3, 1, 0
    Ho = (H + 2 * padding - ks) // stride + 1
    Wo = (W + 2 * padding - ks) // stride + 1
    m = Ho * Wo

    key = jax.random.PRNGKey(0)
    kx, kw_, kb_, kB = jax.random.split(key, 4)
    x = jax.random.normal(kx, (N, C, H, W), jnp.float32)
    # Deterministic synthetic parameters (shapes match nn.Conv2d(C, OC*rank, ks) and B).
    conv_w = 0.1 * jax.random.normal(kw_, (OC * rank, C, ks, ks), jnp.float32)
    conv_b = 0.1 * jax.random.normal(kb_, (OC * rank,), jnp.float32)
    B = 2.0 * jax.random.uniform(kB, (1, OC, m, rank, 1), jnp.float32) - 1.0

    out = gpconv_forward(x, conv_w, conv_b, B, out_channels=OC, rank=rank,
                         kernel_size=ks, stride=stride, padding=padding,
                         compute_dtype=jnp.bfloat16)
    out = jax.block_until_ready(out)

    ref = gpconv_reference(x, conv_w, conv_b, B, out_channels=OC, rank=rank,
                           kernel_size=ks, stride=stride, padding=padding)
    assert out.shape == (N, OC, Ho, Wo), out.shape
    # bf16 matmul operands + bf16-stored B (f32 accumulation) vs. all-f32 reference.
    np.testing.assert_allclose(np.asarray(out), np.asarray(ref), rtol=2e-2, atol=2e-2)
    print("KERNEL_OK")
</pallas_src>

<mosaic_0001>
module attributes {stable_mosaic.version = 11 : i64} {
  func.func @_gpconv_kernel(%arg0: i32, %arg1: i32, %arg2: memref<1x36x256xbf16, #tpu.memory_space<vmem>>, %arg3: memref<64x36xbf16, #tpu.memory_space<vmem>>, %arg4: memref<64x256xbf16, #tpu.memory_space<vmem>>, %arg5: memref<4x256xf32, #tpu.memory_space<vmem>>, %arg6: memref<1x4x256xf32, #tpu.memory_space<vmem>>) attributes {dimension_semantics = [#tpu.dimension_semantics<parallel>, #tpu.dimension_semantics<arbitrary>], iteration_bounds = array<i64: 1, 2>, scalar_prefetch = 0 : i64, scratch_operands = 0 : i64, tpu.core_type = #tpu.core_type<tc>, window_params = [{transform_indices = @transform_0, window_bounds = array<i64: 1, 36, 256>}, {pipeline_mode = #tpu.pipeline_mode<synchronous>, transform_indices = @transform_1, window_bounds = array<i64: 64, 36>}, {transform_indices = @transform_2, window_bounds = array<i64: 64, 256>}, {transform_indices = @transform_3, window_bounds = array<i64: 4, 256>}, {transform_indices = @transform_4, window_bounds = array<i64: 1, 4, 256>}]} {
    %c0 = arith.constant 0 : index
    %c0_0 = arith.constant 0 : index
    %0 = vector.load %arg3[%c0, %c0_0] : memref<64x36xbf16, #tpu.memory_space<vmem>>, vector<64x36xbf16>
    %c0_1 = arith.constant 0 : index
    %c0_2 = arith.constant 0 : index
    %c0_3 = arith.constant 0 : index
    %1 = vector.load %arg2[%c0_1, %c0_2, %c0_3] : memref<1x36x256xbf16, #tpu.memory_space<vmem>>, vector<1x36x256xbf16>
    %2 = vector.shape_cast %1 : vector<1x36x256xbf16> to vector<36x256xbf16>
    %cst = arith.constant dense<0.000000e+00> : vector<64x256xf32>
    %3 = tpu.matmul %0, %2, %cst {dimension_numbers = #tpu.dot_dimension_numbers<[1], [0], [0], [1], [0, 0, 1, 1], [], []>} : vector<64x36xbf16>, vector<36x256xbf16>, vector<64x256xf32> -> vector<64x256xf32>
    %4 = vector.shape_cast %3 : vector<64x256xf32> to vector<4x16x256xf32>
    %c0_4 = arith.constant 0 : index
    %c0_5 = arith.constant 0 : index
    %5 = vector.load %arg4[%c0_4, %c0_5] : memref<64x256xbf16, #tpu.memory_space<vmem>>, vector<64x256xbf16>
    %6 = vector.shape_cast %5 : vector<64x256xbf16> to vector<4x16x256xbf16>
    %c0_6 = arith.constant 0 : index
    %c0_7 = arith.constant 0 : index
    %7 = vector.load %arg5[%c0_6, %c0_7] : memref<4x256xf32, #tpu.memory_space<vmem>>, vector<4x256xf32>
    %8 = vector.extract_strided_slice %4 {offsets = [0, 0, 0], sizes = [4, 8, 256], strides = [1, 1, 1]} : vector<4x16x256xf32> to vector<4x8x256xf32>
    %9 = vector.extract_strided_slice %6 {offsets = [0, 0, 0], sizes = [4, 8, 256], strides = [1, 1, 1]} : vector<4x16x256xbf16> to vector<4x8x256xbf16>
    %10 = arith.extf %9 : vector<4x8x256xbf16> to vector<4x8x256xf32>
    %11 = arith.mulf %8, %10 : vector<4x8x256xf32>
    %cst_8 = arith.constant dense<0.000000e+00> : vector<4x256xf32>
    %12 = vector.multi_reduction <add>, %11, %cst_8 [1] : vector<4x8x256xf32> to vector<4x256xf32>
    %13 = arith.addf %7, %12 : vector<4x256xf32>
    %14 = vector.extract_strided_slice %4 {offsets = [0, 8, 0], sizes = [4, 8, 256], strides = [1, 1, 1]} : vector<4x16x256xf32> to vector<4x8x256xf32>
    %15 = vector.extract_strided_slice %6 {offsets = [0, 8, 0], sizes = [4, 8, 256], strides = [1, 1, 1]} : vector<4x16x256xbf16> to vector<4x8x256xbf16>
    %16 = arith.extf %15 : vector<4x8x256xbf16> to vector<4x8x256xf32>
    %17 = arith.mulf %14, %16 : vector<4x8x256xf32>
    %cst_9 = arith.constant dense<0.000000e+00> : vector<4x256xf32>
    %18 = vector.multi_reduction <add>, %17, %cst_9 [1] : vector<4x8x256xf32> to vector<4x256xf32>
    %19 = arith.addf %13, %18 : vector<4x256xf32>
    %c0_10 = arith.constant 0 : index
    %c0_11 = arith.constant 0 : index
    %c0_12 = arith.constant 0 : index
    %20 = vector.load %arg6[%c0_10, %c0_11, %c0_12] : memref<1x4x256xf32, #tpu.memory_space<vmem>>, vector<1x4x256xf32>
    %21 = vector.shape_cast %20 : vector<1x4x256xf32> to vector<4x256xf32>
    %22 = vector.shape_cast %19 : vector<4x256xf32> to vector<1x4x256xf32>
    tpu.vector_store %arg6[%c0_10, %c0_11, %c0_12], %22 {strides = array<i32>} : memref<1x4x256xf32, #tpu.memory_space<vmem>>, vector<1x4x256xf32>,
    return
  }
  func.func @transform_0(%arg0: i32, %arg1: i32) -> (i32, i32, i32) {
    %c0_i32 = arith.constant 0 : i32
    %c0_i32_0 = arith.constant 0 : i32
    return %arg1, %c0_i32, %arg0 : i32, i32, i32
  }
  func.func @transform_1(%arg0: i32, %arg1: i32) -> (i32, i32) {
    %c0_i32 = arith.constant 0 : i32
    %c0_i32_0 = arith.constant 0 : i32
    %c0_i32_1 = arith.constant 0 : i32
    return %c0_i32, %c0_i32_0 : i32, i32
  }
  func.func @transform_2(%arg0: i32, %arg1: i32) -> (i32, i32) {
    %c0_i32 = arith.constant 0 : i32
    %c0_i32_0 = arith.constant 0 : i32
    return %c0_i32, %arg0 : i32, i32
  }
  func.func @transform_3(%arg0: i32, %arg1: i32) -> (i32, i32) {
    %c0_i32 = arith.constant 0 : i32
    %c0_i32_0 = arith.constant 0 : i32
    return %c0_i32, %arg0 : i32, i32
  }
  func.func @transform_4(%arg0: i32, %arg1: i32) -> (i32, i32, i32) {
    %c0_i32 = arith.constant 0 : i32
    %c0_i32_0 = arith.constant 0 : i32
    return %arg1, %c0_i32, %arg0 : i32, i32, i32
  }
}

</mosaic_0001>

<llo_original>
// kernel: tpu_custom_call.1
$region0: #{tpu_custom_call.1}
  #allocation0 [shape = 'u32[]', space=smem, size = 0x4, offset = 0x4, fixed_abs, tag = 'smem constant byte address 0x4 - core index']
  #allocation1 [shape = 'u32[72,128]{1,0:T(1,128)}', space=vmem, size = 0x9000, scoped, tag = 'internal scratch']
  %s0 = inlined_call_operand.vmem [shape: bf16[2,36,256], index: 0, kind: input, shape index: {}]
  %s1 = inlined_call_operand.vmem [shape: bf16[64,36], index: 1, kind: input, shape index: {}]
  %s2 = inlined_call_operand.vmem [shape: bf16[64,256], index: 2, kind: input, shape index: {}]
  %s3 = inlined_call_operand.vmem [shape: f32[4,256], index: 3, kind: input, shape index: {}]
  %s4 = inlined_call_operand.hbm [shape: f32[2,4,256], index: 4, kind: output, shape index: {}]
  %s5 = sld [smem:[#allocation0]]
  $region49: #{tpu_custom_call.1} parent=0
    _
  %s7 = ssub.s32 1, %s5
  %s8 = scalar_select 0, %s7, %s5
  $region1: #{tpu_custom_call.1} parent=0
    #allocation2 [shape = 'u8[8192]{0}', space=vmem, size = 0x2000, scoped, tag = 'output window, operand 0']
    #allocation3 [shape = 's32[2]{0}', space=sflag, size = 0x8, scoped, tag = 'scoped memory for tpu_custom_call.1']
    %9 = vsyncpa [#allocation3], 0
    %s10 = scalar_lea.sflag [#allocation3], 1
    %11 = vsyncpa %s10, 0
    loop: start=0, step=1, limit=4
    $region2: #{tpu_custom_call.1} parent=1 // loop_pre_header
      _
    $region3: #{tpu_custom_call.1} parent=1 // loop_header
      %s13 = sphi 0, %s17
      %p14 = scmp.ge.s32.totalorder %s13, 4
      %s20 = sphi 0, %s32
      %s21 = sphi 0, %s28
      %s22 = sphi 0, %s20
      %s23 = sphi 0, %s21
      %s24 = sphi 0, %s22
      %s25 = sphi 0, %s23
      %s37 = sphi 0, %s39
      %s40 = sphi 0, %s37
      %s41 = sphi 0, %s40
      %s57 = sphi 0, %s41
      %s61 = sphi 0, %s61
      %s63 = sphi 0, %s61
      %s64 = sphi 0, %s63
      %s78 = sphi 0, %s64
      %s84 = sphi 0, %s86
      %s87 = sphi 0, %s84
      %s88 = sphi 0, %s87
      %s104 = sphi 0, %s88
      %s110 = sphi 0, %s112
      %s113 = sphi 0, %s110
      %s114 = sphi 0, %s113
      %s130 = sphi 0, %s114
      %s138 = sphi 0, %s140
      %s141 = sphi 0, %s138
      %s142 = sphi 0, %s141
      %s158 = sphi 0, %s142
    $region4: #{tpu_custom_call.1} parent=1 // loop_header_branch
      %16 = sbr.rel (%p14) target = $region8
    $region5: #{tpu_custom_call.1} parent=1 // loop_body
      %s18 = ssub.s32 %s13, 1
      %s19 = ssub.s32 %s13, 2
      %s26 = sadd.s32 1, %s21
      %p27 = scmp.ge.s32.totalorder %s26, 2
      %s28 = scalar_select %p27, 0, %s26
      %s29 = sadd.s32 1, %s20
      %s30 = scalar_select %p27, %s29, %s20
      %p31 = scmp.ge.s32.totalorder %s30, 1
      %s32 = scalar_select %p31, 0, %s30
      %s33 = ssub.s32 %s21, %s28
      %s34 = ssub.s32 %s20, %s32
      %s35 = sor.u32 %s33, %s34
      %p36 = scmp.eq.s32.totalorder %s35, 0
      %s38 = sadd.s32 %s37, 1
      %s39 = scalar_select %p36, %s37, %s38
      %p42 = pneg %p36
      %p43 = scmp.eq.s32.totalorder %s13, 1
      %p44 = por %p42, %p43
      %p45 = scmp.ne.s32.totalorder %s37, %s40
      %p46 = scmp.eq.s32.totalorder %s13, 0
      %p47 = por %p45, %p46
      %p48 = scmp.ne.s32.totalorder %s37, %s40
      %p49 = scmp.eq.s32.totalorder %s18, 1
      %p50 = por %p48, %p49
      %p51 = scmp.ne.s32.totalorder %s40, %s41
      %p52 = scmp.eq.s32.totalorder %s18, 0
      %p53 = por %p51, %p52
      %p54 = scmp.ne.s32.totalorder %s40, %s41
      %p55 = scmp.eq.s32.totalorder %s19, 1
      %p56 = por %p54, %p55
      %p58 = scmp.ne.s32.totalorder %s41, %s57
      %p59 = scmp.eq.s32.totalorder %s19, 0
      %p60 = por %p58, %p59
      %s62 = sadd.s32 %s61, 1
      %p65 = scmp.eq.s32.totalorder %s13, 1
      %p66 = scmp.ne.s32.totalorder %s61, %s63
      %p67 = scmp.eq.s32.totalorder %s13, 0
      %p68 = por %p66, %p67
      %p69 = scmp.ne.s32.totalorder %s61, %s63
      %p70 = scmp.eq.s32.totalorder %s18, 1
      %p71 = por %p69, %p70
      %p72 = scmp.ne.s32.totalorder %s63, %s64
      %p73 = scmp.eq.s32.totalorder %s18, 0
      %p74 = por %p72, %p73
      %p75 = scmp.ne.s32.totalorder %s63, %s64
      %p76 = scmp.eq.s32.totalorder %s19, 1
      %p77 = por %p75, %p76
      %p79 = scmp.ne.s32.totalorder %s64, %s78
      %p80 = scmp.eq.s32.totalorder %s19, 0
      %p81 = por %p79, %p80
      %s82 = ssub.s32 %s20, %s32
      %p83 = scmp.eq.s32.totalorder %s82, 0
      %s85 = sadd.s32 %s84, 1
      %s86 = scalar_select %p83, %s84, %s85
      %p89 = pneg %p83
      %p90 = scmp.eq.s32.totalorder %s13, 1
      %p91 = por %p89, %p90
      %p92 = scmp.ne.s32.totalorder %s84, %s87
      %p93 = scmp.eq.s32.totalorder %s13, 0
      %p94 = por %p92, %p93
      %p95 = scmp.ne.s32.totalorder %s84, %s87
      %p96 = scmp.eq.s32.totalorder %s18, 1
      %p97 = por %p95, %p96
      %p98 = scmp.ne.s32.totalorder %s87, %s88
      %p99 = scmp.eq.s32.totalorder %s18, 0
      %p100 = por %p98, %p99
      %p101 = scmp.ne.s32.totalorder %s87, %s88
      %p102 = scmp.eq.s32.totalorder %s19, 1
      %p103 = por %p101, %p102
      %p105 = scmp.ne.s32.totalorder %s88, %s104
      %p106 = scmp.eq.s32.totalorder %s19, 0
      %p107 = por %p105, %p106
      %s108 = ssub.s32 %s20, %s32
      %p109 = scmp.eq.s32.totalorder %s108, 0
      %s111 = sadd.s32 %s110, 1
      %s112 = scalar_select %p109, %s110, %s111
      %p115 = pneg %p109
      %p116 = scmp.eq.s32.totalorder %s13, 1
      %p117 = por %p115, %p116
      %p118 = scmp.ne.s32.totalorder %s110, %s113
      %p119 = scmp.eq.s32.totalorder %s13, 0
      %p120 = por %p118, %p119
      %p121 = scmp.ne.s32.totalorder %s110, %s113
      %p122 = scmp.eq.s32.totalorder %s18, 1
      %p123 = por %p121, %p122
      %p124 = scmp.ne.s32.totalorder %s113, %s114
      %p125 = scmp.eq.s32.totalorder %s18, 0
      %p126 = por %p124, %p125
      %p127 = scmp.ne.s32.totalorder %s113, %s114
      %p128 = scmp.eq.s32.totalorder %s19, 1
      %p129 = por %p127, %p128
      %p131 = scmp.ne.s32.totalorder %s114, %s130
      %p132 = scmp.eq.s32.totalorder %s19, 0
      %p133 = por %p131, %p132
      %s134 = ssub.s32 %s21, %s28
      %s135 = ssub.s32 %s20, %s32
      %s136 = sor.u32 %s134, %s135
      %p137 = scmp.eq.s32.totalorder %s136, 0
      %s139 = sadd.s32 %s138, 1
      %s140 = scalar_select %p137, %s138, %s139
      %p143 = pneg %p137
      %p144 = scmp.eq.s32.totalorder %s13, 1
      %p145 = por %p143, %p144
      %p146 = scmp.ne.s32.totalorder %s138, %s141
      %p147 = scmp.eq.s32.totalorder %s13, 0
      %p148 = por %p146, %p147
      %p149 = scmp.ne.s32.totalorder %s138, %s141
      %p150 = scmp.eq.s32.totalorder %s18, 1
      %p151 = por %p149, %p150
      %p152 = scmp.ne.s32.totalorder %s141, %s142
      %p153 = scmp.eq.s32.totalorder %s18, 0
      %p154 = por %p152, %p153
      %p155 = scmp.ne.s32.totalorder %s141, %s142
      %p156 = scmp.eq.s32.totalorder %s19, 1
      %p157 = por %p155, %p156
      %p159 = scmp.ne.s32.totalorder %s142, %s158
      %p160 = scmp.eq.s32.totalorder %s19, 0
      %p161 = por %p159, %p160
      %p162 = scmp.le.s32.totalorder 1, %s13
      %p163 = scmp.lt.s32.totalorder %s13, 3
      %p164 = pnand %p162, %p163
      %p165 = pneg %p164
      // Predicated region
      $region9: #{tpu_custom_call.1} parent=5 // pred_check
        _
      $region10: #{tpu_custom_call.1} parent=5 // pred_check_branch
        %167 = sbr.rel (%p164) target = $region12
      $region11: #{tpu_custom_call.1} parent=5 // pred_region
        %s168 = ssub.s32 %s13, 1
        // Predicated region
        $region13: #{tpu_custom_call.1} parent=11 // pred_check
          %p169 = pneg %p74
        $region14: #{tpu_custom_call.1} parent=11 // pred_check_branch
          %171 = sbr.rel (%p169) target = $region16
        $region15: #{tpu_custom_call.1} parent=11 // pred_region
          _
        $region16: #{tpu_custom_call.1} parent=11 // pred_fallthru
          _
        // Predicated region
        $region17: #{tpu_custom_call.1} parent=11 // pred_check
          %p172 = pneg %p100
        $region18: #{tpu_custom_call.1} parent=11 // pred_check_branch
          %174 = sbr.rel (%p172) target = $region20
        $region19: #{tpu_custom_call.1} parent=11 // pred_region
          %s175 = smul.u32 2, %s22
          %p176 = scmp.lt.s32.totalorder %s175, 1
          %s177 = scalar_select %p176, %s175, 1
          %s178 = smul.addr %s177, 4
          %s179 = scalar_lea.vmem %s2, %s178
          %s180 = smul.u32 2, %s22
        $region20: #{tpu_custom_call.1} parent=11 // pred_fallthru
          _
        // Predicated region
        $region21: #{tpu_custom_call.1} parent=11 // pred_check
          %p181 = pneg %p126
        $region22: #{tpu_custom_call.1} parent=11 // pred_check_branch
          %183 = sbr.rel (%p181) target = $region24
        $region23: #{tpu_custom_call.1} parent=11 // pred_region
          %s184 = smul.u32 2, %s22
          %p185 = scmp.lt.s32.totalorder %s184, 1
          %s186 = scalar_select %p185, %s184, 1
          %s187 = smul.addr %s186, 4
          %s188 = scalar_lea.vmem %s3, %s187
          %s189 = smul.u32 2, %s22
        $region24: #{tpu_custom_call.1} parent=11 // pred_fallthru
          _
      $region12: #{tpu_custom_call.1} parent=5 // pred_fallthru
        _
      %p190 = scmp.lt.s32.totalorder %s13, 2
      // Predicated region
      $region25: #{tpu_custom_call.1} parent=5 // pred_check
        %p191 = pneg %p190
      $region26: #{tpu_custom_call.1} parent=5 // pred_check_branch
        %193 = sbr.rel (%p191) target = $region28
      $region27: #{tpu_custom_call.1} parent=5 // pred_region
        // Predicated region
        $region29: #{tpu_custom_call.1} parent=27 // pred_check
          %p194 = pneg %p47
        $region30: #{tpu_custom_call.1} parent=27 // pred_check_branch
          %196 = sbr.rel (%p194) target = $region32
        $region31: #{tpu_custom_call.1} parent=27 // pred_region
          %s197 = smul.u32 2, %s20
          %p198 = scmp.lt.s32.totalorder %s21, 1
          %s199 = scalar_select %p198, %s21, 1
          %p200 = scmp.lt.s32.totalorder %s197, 1
          %s201 = scalar_select %p200, %s197, 1
          %s202 = smul.addr %s199, 10
          %s203 = sadd.s32 %s201, %s202
          %s204 = smul.addr %s203, 4
          %s205 = scalar_lea.vmem %s0, %s204
          %s206 = smul.u32 2, %s20
        $region32: #{tpu_custom_call.1} parent=27 // pred_fallthru
          _
      $region28: #{tpu_custom_call.1} parent=5 // pred_fallthru
        _
      %p207 = scmp.le.s32.totalorder 1, %s13
      %p208 = scmp.lt.s32.totalorder %s13, 3
      %p209 = pnand %p207, %p208
      %p210 = pneg %p209
      // Predicated region
      $region33: #{tpu_custom_call.1} parent=5 // pred_check
        _
      $region34: #{tpu_custom_call.1} parent=5 // pred_check_branch
        %212 = sbr.rel (%p209) target = $region36
      $region35: #{tpu_custom_call.1} parent=5 // pred_region
        %s213 = ssub.s32 %s13, 1
        %s214 = smul.u32 2, %s22
        %p215 = scmp.lt.s32.totalorder %s23, 1
        %s216 = scalar_select %p215, %s23, 1
        %p217 = scmp.lt.s32.totalorder %s214, 1
        %s218 = scalar_select %p217, %s214, 1
        %s219 = smul.addr %s216, 10
        %s220 = sadd.s32 %s218, %s219
        %s221 = smul.addr %s220, 4
        %s222 = scalar_lea.vmem %s0, %s221
        %p223 = pneg %p53
        %p224 = pneg %p50
        %p225 = pneg %p74
        %p226 = pneg %p71
        %s227 = smul.u32 2, %s22
        %p228 = scmp.lt.s32.totalorder %s227, 1
        %s229 = scalar_select %p228, %s227, 1
        %s230 = smul.addr %s229, 4
        %s231 = scalar_lea.vmem %s2, %s230
        %p232 = pneg %p100
        %p233 = pneg %p97
        %s234 = smul.u32 2, %s22
        %p235 = scmp.lt.s32.totalorder %s234, 1
        %s236 = scalar_select %p235, %s234, 1
        %s237 = smul.addr %s236, 4
        %s238 = scalar_lea.vmem %s3, %s237
        %p239 = pneg %p126
        %p240 = pneg %p123
        %p241 = pneg %p154
        %p242 = pneg %p151
        %s243 = sand.u32 %s141, 1
        %s244 = scalar_lea.sflag [#allocation3], %s243
        %s245 = sand.u32 %s141, 1
        %s246 = smul.addr %s245, 8
        %s247 = scalar_lea.vmem [#allocation2], %s246
        %s248 = smul.u32 2, %s22
        %p249 = scmp.lt.s32.totalorder %s23, 1
        %s250 = scalar_select %p249, %s23, 1
        %p251 = scmp.lt.s32.totalorder %s248, 1
        %s252 = scalar_select %p251, %s248, 1
        %s253 = smul.addr %s250, 10
        %s254 = sadd.s32 %s252, %s253
        %s255 = smul.addr %s254, 4
        %s256 = scalar_lea.vmem %s0, %s255
        %s257 = smul.u32 2, %s22
        %s258 = smul.u32 2, %s22
        %p259 = scmp.lt.s32.totalorder %s258, 1
        %s260 = scalar_select %p259, %s258, 1
        %s261 = smul.addr %s260, 4
        %s262 = scalar_lea.vmem %s2, %s261
        %s263 = smul.u32 2, %s22
        %s264 = smul.u32 2, %s22
        %p265 = scmp.lt.s32.totalorder %s264, 1
        %s266 = scalar_select %p265, %s264, 1
        %s267 = smul.addr %s266, 4
        %s268 = scalar_lea.vmem %s3, %s267
        %s269 = smul.u32 2, %s22
        %s270 = smul.u32 2, %s22
        %v272 = vld [vmem:[%s1] sm:$0xf]
        %v273 = vld [vmem:[%s1 + $0x4] sm:$0xf]
        %v274 = vld [vmem:[%s1 + $0x8] sm:$0xf]
        %v275 = vld [vmem:[%s1 + $0xc] sm:$0xf]
        %v276 = vld [vmem:[%s1 + $0x10] sm:$0xf]
        %v277 = vld [vmem:[%s1 + $0x14] sm:$0xf]
        %v278 = vld [vmem:[%s1 + $0x18] sm:$0xf]
        %v279 = vld [vmem:[%s1 + $0x1c] sm:$0xf]
        %v280 = vld [vmem:[%s256] sm:$0xff]
        %v281 = vld [vmem:[%s256 + $0x8] sm:$0xff]
        %v282 = vld [vmem:[%s256 + $0x10] sm:$0xff]
        %v283 = vld [vmem:[%s256 + $0x18] sm:$0xff]
        %v284 = vld [vmem:[%s256 + $0x20] sm:$0x33]
        %v293 = vunpack.c.l.b16 %v272
        %v294 = vunpack.c.l.b16 %v273
        %v295 = vunpack.c.l.b16 %v274
        %v296 = vunpack.c.l.b16 %v275
        %v297 = vunpack.c.l.b16 %v276
        %v298 = vunpack.c.l.b16 %v277
        %v299 = vunpack.c.l.b16 %v278
        %v300 = vunpack.c.l.b16 %v279
        %v301 = vpack.c.b16 %v294, %v293
        %v302 = vpack.c.b16 %v296, %v295
        %v303 = vpack.c.b16 %v298, %v297
        %v304 = vpack.c.b16 %v300, %v299
        %v310 = vunpack.c.l.b16 %v280
        %v311 = vunpack.c.h.b16 %v280
        %v312 = vunpack.c.l.b16 %v281
        %v313 = vunpack.c.h.b16 %v281
        %v314 = vunpack.c.l.b16 %v282
        %v315 = vunpack.c.h.b16 %v282
        %v316 = vunpack.c.l.b16 %v283
        %v317 = vunpack.c.h.b16 %v283
        %v318 = vunpack.c.l.b16 %v284
        %v319 = vunpack.c.h.b16 %v284
        %v320 = vpack.c.b16 %v312, %v310
        %v321 = vpack.c.b16 %v313, %v311
        %v322 = vpack.c.b16 %v316, %v314
        %v323 = vpack.c.b16 %v317, %v315
        %v324 = vpack.c.b16 %v318, %v318
        %v325 = vpack.c.b16 %v319, %v319
        %vm330 = vcmask 293888
        %v332 = vsel %vm330, %v301, 0
        %v335 = vsel %vm330, %v302, 0
        %v338 = vsel %vm330, %v303, 0
        %v341 = vsel %vm330, %v304, 0
        %vm343 = vcmask 1041408
        %v345 = vsel %vm343, %v324, 0
        %v348 = vsel %vm343, %v325, 0
        %350 = vmatpush.bf16.msra.mxu0 0
        %351 = vmatpush.bf16.msra.mxu0 0
        %352 = vmatpush.bf16.msra.mxu0 0
        %353 = vmatpush.bf16.msra.mxu0 0
        %354 = vmatpush.bf16.msra.mxu0 0
        %355 = vmatpush.bf16.msra.mxu0 %v345
        %356 = vmatpush.bf16.msra.mxu0 %v322
        %357 = vmatpush.bf16.msra.mxu0 %v320
        %358 = vmatmul.bf16.gmra.mxu0 %v332
        %v359 = vpop.f32.mrf.mxu0
        %v360 = vadd.f32 0.0, %v359
        %v361 = vpop.f32.mrf.mxu0
        %v362 = vadd.f32 0.0, %v361
        %363 = vmatmul.bf16.gmra.mxu0 %v335
        %v364 = vpop.f32.mrf.mxu0
        %v365 = vadd.f32 0.0, %v364
        %v366 = vpop.f32.mrf.mxu0
        %v367 = vadd.f32 0.0, %v366
        %368 = vmatmul.bf16.gmra.mxu0 %v338
        %v369 = vpop.f32.mrf.mxu0
        %v370 = vadd.f32 0.0, %v369
        %v371 = vpop.f32.mrf.mxu0
        %v372 = vadd.f32 0.0, %v371
        %373 = vmatmul.bf16.gmra.mxu0 %v341
        %v374 = vpop.f32.mrf.mxu0
        %v375 = vadd.f32 0.0, %v374
        %v376 = vpop.f32.mrf.mxu0
        %v377 = vadd.f32 0.0, %v376
        %378 = vdwg.mxu0
        %379 = vmatpush.bf16.msra.mxu0 0
        %380 = vmatpush.bf16.msra.mxu0 0
        %381 = vmatpush.bf16.msra.mxu0 0
        %382 = vmatpush.bf16.msra.mxu0 0
        %383 = vmatpush.bf16.msra.mxu0 0
        %384 = vmatpush.bf16.msra.mxu0 %v348
        %385 = vmatpush.bf16.msra.mxu0 %v323
        %386 = vmatpush.bf16.msra.mxu0 %v321
        %387 = vmatmul.bf16.gmra.mxu0 %v332
        %v388 = vpop.f32.mrf.mxu0
        %v389 = vadd.f32 0.0, %v388
        %v390 = vpop.f32.mrf.mxu0
        %v391 = vadd.f32 0.0, %v390
        %392 = vmatmul.bf16.gmra.mxu0 %v335
        %v393 = vpop.f32.mrf.mxu0
        %v394 = vadd.f32 0.0, %v393
        %v395 = vpop.f32.mrf.mxu0
        %v396 = vadd.f32 0.0, %v395
        %397 = vmatmul.bf16.gmra.mxu0 %v338
        %v398 = vpop.f32.mrf.mxu0
        %v399 = vadd.f32 0.0, %v398
        %v400 = vpop.f32.mrf.mxu0
        %v401 = vadd.f32 0.0, %v400
        %402 = vmatmul.bf16.gmra.mxu0 %v341
        %v403 = vpop.f32.mrf.mxu0
        %v404 = vadd.f32 0.0, %v403
        %v405 = vpop.f32.mrf.mxu0
        %v406 = vadd.f32 0.0, %v405
        %407 = vdwg.mxu0
        %v408 = vld [vmem:[%s262] sm:$0xff]
        %v409 = vld [vmem:[%s262 + $0x8] sm:$0xff]
        %v410 = vld [vmem:[%s262 + $0x10] sm:$0xff]
        %v411 = vld [vmem:[%s262 + $0x18] sm:$0xff]
        %v412 = vld [vmem:[%s262 + $0x20] sm:$0xff]
        %v413 = vld [vmem:[%s262 + $0x28] sm:$0xff]
        %v414 = vld [vmem:[%s262 + $0x30] sm:$0xff]
        %v415 = vld [vmem:[%s262 + $0x38] sm:$0xff]
        %v416 = vld [vmem:[%s268] sm:$0xff]
        %v417 = vunpack.c.l.bf16 %v408
        %v418 = vunpack.c.h.bf16 %v408
        %v419 = vunpack.c.l.bf16 %v410
        %v420 = vunpack.c.h.bf16 %v410
        %v421 = vunpack.c.l.bf16 %v412
        %v422 = vunpack.c.h.bf16 %v412
        %v423 = vunpack.c.l.bf16 %v414
        %v424 = vunpack.c.h.bf16 %v414
        %v425 = vmul.f32 %v360, %v417
        %v426 = vmul.f32 %v389, %v418
        %v427 = vmul.f32 %v365, %v419
        %v428 = vmul.f32 %v394, %v420
        %v429 = vmul.f32 %v370, %v421
        %v430 = vmul.f32 %v399, %v422
        %v431 = vmul.f32 %v375, %v423
        %v432 = vmul.f32 %v404, %v424
        %v433 = vrot.slane %v425, 4
        %v434 = vadd.f32 %v425, %v433
        %v435 = vrot.slane %v434, 2
        %v436 = vadd.f32 %v434, %v435
        %v437 = vrot.slane %v436, 1
        %v438 = vadd.f32 %v436, %v437
        %v439 = vrot.slane %v426, 4
        %v440 = vadd.f32 %v426, %v439
        %v441 = vrot.slane %v440, 2
        %v442 = vadd.f32 %v440, %v441
        %v443 = vrot.slane %v442, 1
        %v444 = vadd.f32 %v442, %v443
        %v445 = vrot.slane %v427, 4
        %v446 = vadd.f32 %v427, %v445
        %v447 = vrot.slane %v446, 2
        %v448 = vadd.f32 %v446, %v447
        %v449 = vrot.slane %v448, 1
        %v450 = vadd.f32 %v448, %v449
        %v451 = vrot.slane %v428, 4
        %v452 = vadd.f32 %v428, %v451
        %v453 = vrot.slane %v452, 2
        %v454 = vadd.f32 %v452, %v453
        %v455 = vrot.slane %v454, 1
        %v456 = vadd.f32 %v454, %v455
        %v457 = vrot.slane %v429, 4
        %v458 = vadd.f32 %v429, %v457
        %v459 = vrot.slane %v458, 2
        %v460 = vadd.f32 %v458, %v459
        %v461 = vrot.slane %v460, 1
        %v462 = vadd.f32 %v460, %v461
        %v463 = vrot.slane %v430, 4
        %v464 = vadd.f32 %v430, %v463
        %v465 = vrot.slane %v464, 2
        %v466 = vadd.f32 %v464, %v465
        %v467 = vrot.slane %v466, 1
        %v468 = vadd.f32 %v466, %v467
        %v469 = vrot.slane %v431, 4
        %v470 = vadd.f32 %v431, %v469
        %v471 = vrot.slane %v470, 2
        %v472 = vadd.f32 %v470, %v471
        %v473 = vrot.slane %v472, 1
        %v474 = vadd.f32 %v472, %v473
        %v475 = vrot.slane %v432, 4
        %v476 = vadd.f32 %v432, %v475
        %v477 = vrot.slane %v476, 2
        %v478 = vadd.f32 %v476, %v477
        %v479 = vrot.slane %v478, 1
        %v480 = vadd.f32 %v478, %v479
        %v489 = vrot.slane %v444, 4
        %v490 = vrot.slane %v456, 4
        %v491 = vrot.slane %v468, 4
        %v492 = vrot.slane %v480, 4
        %vm493 = vcmask 1043456
        %v494 = vsel %vm493, %v438, %v489
        %v495 = vsel %vm493, %v450, %v490
        %v496 = vsel %vm493, %v462, %v491
        %v497 = vsel %vm493, %v474, %v492
        %v498 = vrot.slane %v495, 7
        %vm499 = vcmask 1041409
        %v500 = vsel %vm499, %v498, %v494
        %vm501 = vcmask 1045509
        %v502 = vsel %vm501, %v498, %v500
        %v503 = vrot.slane %v496, 6
        %vm504 = vcmask 1042434
        %v505 = vsel %vm504, %v503, %v502
        %vm506 = vcmask 1046534
        %v507 = vsel %vm506, %v503, %v505
        %v508 = vrot.slane %v497, 5
        %vm509 = vcmask 1043459
        %v510 = vsel %vm509, %v508, %v507
        %vm511 = vcmask 1047559
        %v512 = vsel %vm511, %v508, %v510
        %v514 = vadd.f32 %v416, %v512
        %v515 = vunpack.c.l.bf16 %v409
        %v516 = vunpack.c.h.bf16 %v409
        %v517 = vunpack.c.l.bf16 %v411
        %v518 = vunpack.c.h.bf16 %v411
        %v519 = vunpack.c.l.bf16 %v413
        %v520 = vunpack.c.h.bf16 %v413
        %v521 = vunpack.c.l.bf16 %v415
        %v522 = vunpack.c.h.bf16 %v415
        %v523 = vmul.f32 %v362, %v515
        %v524 = vmul.f32 %v391, %v516
        %v525 = vmul.f32 %v367, %v517
        %v526 = vmul.f32 %v396, %v518
        %v527 = vmul.f32 %v372, %v519
        %v528 = vmul.f32 %v401, %v520
        %v529 = vmul.f32 %v377, %v521
        %v530 = vmul.f32 %v406, %v522
        %v531 = vrot.slane %v523, 4
        %v532 = vadd.f32 %v523, %v531
        %v533 = vrot.slane %v532, 2
        %v534 = vadd.f32 %v532, %v533
        %v535 = vrot.slane %v534, 1
        %v536 = vadd.f32 %v534, %v535
        %v537 = vrot.slane %v524, 4
        %v538 = vadd.f32 %v524, %v537
        %v539 = vrot.slane %v538, 2
        %v540 = vadd.f32 %v538, %v539
        %v541 = vrot.slane %v540, 1
        %v542 = vadd.f32 %v540, %v541
        %v543 = vrot.slane %v525, 4
        %v544 = vadd.f32 %v525, %v543
        %v545 = vrot.slane %v544, 2
        %v546 = vadd.f32 %v544, %v545
        %v547 = vrot.slane %v546, 1
        %v548 = vadd.f32 %v546, %v547
        %v549 = vrot.slane %v526, 4
        %v550 = vadd.f32 %v526, %v549
        %v551 = vrot.slane %v550, 2
        %v552 = vadd.f32 %v550, %v551
        %v553 = vrot.slane %v552, 1
        %v554 = vadd.f32 %v552, %v553
        %v555 = vrot.slane %v527, 4
        %v556 = vadd.f32 %v527, %v555
        %v557 = vrot.slane %v556, 2
        %v558 = vadd.f32 %v556, %v557
        %v559 = vrot.slane %v558, 1
        %v560 = vadd.f32 %v558, %v559
        %v561 = vrot.slane %v528, 4
        %v562 = vadd.f32 %v528, %v561
        %v563 = vrot.slane %v562, 2
        %v564 = vadd.f32 %v562, %v563
        %v565 = vrot.slane %v564, 1
        %v566 = vadd.f32 %v564, %v565
        %v567 = vrot.slane %v529, 4
        %v568 = vadd.f32 %v529, %v567
        %v569 = vrot.slane %v568, 2
        %v570 = vadd.f32 %v568, %v569
        %v571 = vrot.slane %v570, 1
        %v572 = vadd.f32 %v570, %v571
        %v573 = vrot.slane %v530, 4
        %v574 = vadd.f32 %v530, %v573
        %v575 = vrot.slane %v574, 2
        %v576 = vadd.f32 %v574, %v575
        %v577 = vrot.slane %v576, 1
        %v578 = vadd.f32 %v576, %v577
        %v587 = vrot.slane %v542, 4
        %v588 = vrot.slane %v554, 4
        %v589 = vrot.slane %v566, 4
        %v590 = vrot.slane %v578, 4
        %v591 = vsel %vm493, %v536, %v587
        %v592 = vsel %vm493, %v548, %v588
        %v593 = vsel %vm493, %v560, %v589
        %v594 = vsel %vm493, %v572, %v590
        %v595 = vrot.slane %v592, 7
        %v596 = vsel %vm499, %v595, %v591
        %v597 = vsel %vm501, %v595, %v596
        %v598 = vrot.slane %v593, 6
        %v599 = vsel %vm504, %v598, %v597
        %v600 = vsel %vm506, %v598, %v599
        %v601 = vrot.slane %v594, 5
        %v602 = vsel %vm509, %v601, %v600
        %v603 = vsel %vm511, %v601, %v602
        %v605 = vadd.f32 %v514, %v603
        %606 = vst [vmem:[%s247] sm:$0xff] %v605
        %s607 = sand.u32 %s141, 1
        %s608 = scalar_lea.sflag [#allocation3], %s607
        %s609 = sand.u32 %s141, 1
        %s610 = smul.addr %s609, 8
        %s611 = scalar_lea.vmem [#allocation2], %s610
        // Predicated region
        $region37: #{tpu_custom_call.1} parent=35 // pred_check
          %p612 = pneg %p151
        $region38: #{tpu_custom_call.1} parent=35 // pred_check_branch
          %614 = sbr.rel (%p612) target = $region40
        $region39: #{tpu_custom_call.1} parent=35 // pred_region
          %s615 = smul.u32 2, %s22
          %617 = vsyncadd %s608, 0
          %s618 = smul.addr %s23, 2
          %s619 = sadd.s32 %s615, %s618
          %s620 = smul.addr %s619, 4
          %s621 = scalar_lea.hbm %s4, %s620
          %s623 = sshll.u32 %s611, 4
          %s624 = int_to_ptr.vmem [resolvable:$true] %s623
          %s625 = sshll.u32 %s621, 4
          %s626 = int_to_ptr.hbm [resolvable:$true] %s625
          %628 = dma.vmem_to_hbm [thread:$0]  %s624, 128, %s626, %s608
        $region40: #{tpu_custom_call.1} parent=35 // pred_fallthru
          _
      $region36: #{tpu_custom_call.1} parent=5 // pred_fallthru
        _
      %p629 = scmp.le.s32.totalorder 2, %s13
      // Predicated region
      $region41: #{tpu_custom_call.1} parent=5 // pred_check
        %p630 = pneg %p629
      $region42: #{tpu_custom_call.1} parent=5 // pred_check_branch
        %632 = sbr.rel (%p630) target = $region44
      $region43: #{tpu_custom_call.1} parent=5 // pred_region
        %s633 = ssub.s32 %s13, 2
        // Predicated region
        $region45: #{tpu_custom_call.1} parent=43 // pred_check
          %p634 = pneg %p157
        $region46: #{tpu_custom_call.1} parent=43 // pred_check_branch
          %636 = sbr.rel (%p634) target = $region48
        $region47: #{tpu_custom_call.1} parent=43 // pred_region
          %s637 = sand.u32 %s142, 1
          %s638 = scalar_lea.sflag [#allocation3], %s637
          %s639 = sand.u32 %s142, 1
          %s640 = smul.addr %s639, 8
          %s641 = scalar_lea.vmem [#allocation2], %s640
          %643 = dma.done %s638, 128
        $region48: #{tpu_custom_call.1} parent=43 // pred_fallthru
          _
      $region44: #{tpu_custom_call.1} parent=5 // pred_fallthru
        _
    $region6: #{tpu_custom_call.1} parent=1 // loop_footer
      %s17 = sadd.s32 1, %s13
    $region7: #{tpu_custom_call.1} parent=1 // loop_footer_branch
      %12 = sbr.rel target = $region3
    $region8: #{tpu_custom_call.1} parent=1 // loop_exit
      _
    %644 = vsyncpa [#allocation3], 1
    %s645 = scalar_lea.sflag [#allocation3], 1
    %646 = vsyncpa %s645, 1

</llo_original>
